<compile_context>
chip_gen: v6e
topology: v6e:2x2x1
jax: 0.10.0
libtpu: 0.0.40
codegen_flags: <defaults>
</compile_context>

<pallas_src>
import functools

import jax
import jax.numpy as jnp
from jax import lax
from jax.experimental import pallas as pl
from jax.experimental.pallas import tpu as pltpu

EPS = 1e-6


def sublayer_connection_kernel(x_ref, w_ref, b_ref, a2_ref, b2_ref, o_ref, *,
                               valid_h):
    x = x_ref[...]                                   # (TM, Hp) f32
    hp = x.shape[-1]

    # --- LayerNorm (torch-style unbiased std, eps added to std), f32 ---
    if valid_h == hp:
        mean = jnp.mean(x, axis=-1, keepdims=True)
        xc = x - mean
    else:
        # Hidden dim is zero-padded to Hp; compute stats over the valid width.
        col = lax.broadcasted_iota(jnp.int32, x.shape, dimension=1)
        lane_mask = col < valid_h
        mean = jnp.sum(x, axis=-1, keepdims=True) / valid_h
        xc = jnp.where(lane_mask, x - mean, 0.0)

    var_unbiased = jnp.sum(xc * xc, axis=-1, keepdims=True) / (valid_h - 1)
    std = jnp.sqrt(var_unbiased)
    inv = pl.reciprocal(std + EPS, approx=True)      # EUP, frees VALU slots
    normed = a2_ref[...] * xc * inv + b2_ref[...]    # padded cols -> 0 (a2/b2 pad = 0)

    # --- sublayer: Linear(H, H); bf16 MXU inputs, f32 accumulation ---
    y = jnp.dot(normed.astype(jnp.bfloat16), w_ref[...],
                preferred_element_type=jnp.float32)
    y = y + b_ref[...]

    # --- dropout (eval mode == identity) + residual, f32 ---
    o_ref[...] = x + y


def _vmem_estimate_bytes(tm, hp):
    # x in + out, double-buffered f32, plus double-buffered bf16 weight + params.
    return 2 * 2 * tm * hp * 4 + 2 * hp * hp * 2 + 6 * hp * 4


def sublayer_connection(x, w, b, a2, b2, *, tile_rows=512,
                        vmem_limit_bytes=64 * 1024 * 1024):
    """x: (B, S, H) float32.  w: (H_in, H_out) pre-transposed.  b, a2, b2: (H,)."""
    B, S, H = x.shape
    R = B * S

    # Lane-dense hidden padding (multiple of 128).
    Hp = max(128, ((H + 127) // 128) * 128)

    # Row tile: large, multiple of 8, clamped to the problem and VMEM budget.
    tm = min(int(tile_rows), ((R + 7) // 8) * 8)
    tm = max(8, (tm // 8) * 8)
    while tm > 8 and _vmem_estimate_bytes(tm, Hp) > int(0.8 * vmem_limit_bytes):
        tm = max(8, (tm // 2 // 8) * 8)
    Rp = ((R + tm - 1) // tm) * tm

    x2 = x.reshape(R, H).astype(jnp.float32)
    if Rp != R or Hp != H:
        x2 = jnp.pad(x2, ((0, Rp - R), (0, Hp - H)))
    w_p = jnp.pad(w.astype(jnp.float32), ((0, Hp - H), (0, Hp - H))).astype(jnp.bfloat16)
    b_p = jnp.pad(b.astype(jnp.float32), (0, Hp - H)).reshape(1, Hp)
    a2_p = jnp.pad(a2.astype(jnp.float32), (0, Hp - H)).reshape(1, Hp)
    b2_p = jnp.pad(b2.astype(jnp.float32), (0, Hp - H)).reshape(1, Hp)

    grid = (Rp // tm,)
    kernel = functools.partial(sublayer_connection_kernel, valid_h=H)

    out = pl.pallas_call(
        kernel,
        out_shape=jax.ShapeDtypeStruct((Rp, Hp), jnp.float32),
        grid_spec=pltpu.PrefetchScalarGridSpec(
            num_scalar_prefetch=0,
            grid=grid,
            in_specs=[
                pl.BlockSpec((tm, Hp), lambda i: (i, 0)),   # x rows
                pl.BlockSpec((Hp, Hp), lambda i: (0, 0)),   # weight (resident)
                pl.BlockSpec((1, Hp), lambda i: (0, 0)),    # bias
                pl.BlockSpec((1, Hp), lambda i: (0, 0)),    # a_2
                pl.BlockSpec((1, Hp), lambda i: (0, 0)),    # b_2
            ],
            out_specs=pl.BlockSpec((tm, Hp), lambda i: (i, 0)),
        ),
        compiler_params=pltpu.CompilerParams(
            dimension_semantics=("parallel",),
            vmem_limit_bytes=vmem_limit_bytes),
    )(x2, w_p, b_p, a2_p, b2_p)

    return out[:R, :H].reshape(B, S, H)


def reference(x, w, b, a2, b2):
    H = x.shape[-1]
    mean = jnp.mean(x, axis=-1, keepdims=True)
    xc = x - mean
    std = jnp.sqrt(jnp.sum(xc * xc, axis=-1, keepdims=True) / (H - 1))
    normed = a2 * xc / (std + EPS) + b2
    y = normed @ w + b
    return x + y


if __name__ == "__main__":
    B, S, H = 2, 8, 32
    key = jax.random.PRNGKey(0)
    kx, kw, kb = jax.random.split(key, 3)

    x = jax.random.normal(kx, (B, S, H), dtype=jnp.float32)
    # Deterministic "sublayer" Linear(H, H) params (pre-transposed to (in, out)).
    w = jax.random.normal(kw, (H, H), dtype=jnp.float32) * 0.05
    b = jax.random.normal(kb, (H,), dtype=jnp.float32) * 0.01
    # LayerNorm params as in __init__: ones / zeros.
    a2 = jnp.ones((H,), dtype=jnp.float32)
    b2 = jnp.zeros((H,), dtype=jnp.float32)

    out = sublayer_connection(x, w, b, a2, b2)
    out = jax.block_until_ready(out)

    ref = reference(x, w, b, a2, b2)
    assert out.shape == (B, S, H)
    # bf16 matmul + approx reciprocal => looser tolerance than pure f32.
    assert jnp.allclose(out, ref, atol=2e-2, rtol=2e-2), "mismatch vs reference"
    print("KERNEL_OK")
</pallas_src>

<mosaic_0001>
module attributes {stable_mosaic.version = 11 : i64} {
  func.func @sublayer_connection_kernel(%arg0: i32, %arg1: memref<16x128xf32, #tpu.memory_space<vmem>>, %arg2: memref<128x128xbf16, #tpu.memory_space<vmem>>, %arg3: memref<1x128xf32, #tpu.memory_space<vmem>>, %arg4: memref<1x128xf32, #tpu.memory_space<vmem>>, %arg5: memref<1x128xf32, #tpu.memory_space<vmem>>, %arg6: memref<16x128xf32, #tpu.memory_space<vmem>>) attributes {dimension_semantics = [#tpu.dimension_semantics<parallel>], iteration_bounds = array<i64: 1>, scalar_prefetch = 0 : i64, scratch_operands = 0 : i64, tpu.core_type = #tpu.core_type<tc>, window_params = [{transform_indices = @transform_0, window_bounds = array<i64: 16, 128>}, {pipeline_mode = #tpu.pipeline_mode<synchronous>, transform_indices = @transform_1, window_bounds = array<i64: 128, 128>}, {pipeline_mode = #tpu.pipeline_mode<synchronous>, transform_indices = @transform_2, window_bounds = array<i64: 1, 128>}, {pipeline_mode = #tpu.pipeline_mode<synchronous>, transform_indices = @transform_3, window_bounds = array<i64: 1, 128>}, {pipeline_mode = #tpu.pipeline_mode<synchronous>, transform_indices = @transform_4, window_bounds = array<i64: 1, 128>}, {transform_indices = @transform_5, window_bounds = array<i64: 16, 128>}]} {
    %c0 = arith.constant 0 : index
    %c0_0 = arith.constant 0 : index
    %0 = vector.load %arg1[%c0, %c0_0] : memref<16x128xf32, #tpu.memory_space<vmem>>, vector<16x128xf32>
    %1 = tpu.iota {dimensions = array<i32: 1>} : vector<16x128xi32>
    %c32_i32 = arith.constant 32 : i32
    %2 = vector.broadcast %c32_i32 : i32 to vector<16x128xi32>
    %3 = arith.cmpi slt, %1, %2 : vector<16x128xi32>
    %cst = arith.constant dense<0.000000e+00> : vector<16xf32>
    %4 = vector.multi_reduction <add>, %0, %cst [1] : vector<16x128xf32> to vector<16xf32>
    %5 = vector.shape_cast %4 : vector<16xf32> to vector<16x1xf32>
    %cst_1 = arith.constant 3.200000e+01 : f32
    %6 = vector.broadcast %cst_1 : f32 to vector<16x1xf32>
    %7 = arith.divf %5, %6 : vector<16x1xf32>
    %8 = vector.broadcast %7 : vector<16x1xf32> to vector<16x128xf32>
    %9 = arith.subf %0, %8 : vector<16x128xf32>
    %cst_2 = arith.constant 0.000000e+00 : f32
    %10 = vector.broadcast %cst_2 : f32 to vector<16x128xf32>
    %11 = arith.select %3, %9, %10 : vector<16x128xi1>, vector<16x128xf32>
    %12 = arith.mulf %11, %11 : vector<16x128xf32>
    %cst_3 = arith.constant dense<0.000000e+00> : vector<16xf32>
    %13 = vector.multi_reduction <add>, %12, %cst_3 [1] : vector<16x128xf32> to vector<16xf32>
    %14 = vector.shape_cast %13 : vector<16xf32> to vector<16x1xf32>
    %cst_4 = arith.constant 3.100000e+01 : f32
    %15 = vector.broadcast %cst_4 : f32 to vector<16x1xf32>
    %16 = arith.divf %14, %15 : vector<16x1xf32>
    %17 = math.sqrt %16 : vector<16x1xf32>
    %cst_5 = arith.constant 9.99999997E-7 : f32
    %18 = vector.broadcast %cst_5 : f32 to vector<16x1xf32>
    %19 = arith.addf %17, %18 : vector<16x1xf32>
    %20 = tpu.reciprocal %19 {approx = true} : vector<16x1xf32> -> vector<16x1xf32>
    %c0_6 = arith.constant 0 : index
    %c0_7 = arith.constant 0 : index
    %21 = vector.load %arg4[%c0_6, %c0_7] : memref<1x128xf32, #tpu.memory_space<vmem>>, vector<1x128xf32>
    %22 = vector.broadcast %21 : vector<1x128xf32> to vector<16x128xf32>
    %23 = arith.mulf %22, %11 : vector<16x128xf32>
    %24 = vector.broadcast %20 : vector<16x1xf32> to vector<16x128xf32>
    %25 = arith.mulf %23, %24 : vector<16x128xf32>
    %c0_8 = arith.constant 0 : index
    %c0_9 = arith.constant 0 : index
    %26 = vector.load %arg5[%c0_8, %c0_9] : memref<1x128xf32, #tpu.memory_space<vmem>>, vector<1x128xf32>
    %27 = vector.broadcast %26 : vector<1x128xf32> to vector<16x128xf32>
    %28 = arith.addf %25, %27 : vector<16x128xf32>
    %29 = arith.truncf %28 : vector<16x128xf32> to vector<16x128xbf16>
    %c0_10 = arith.constant 0 : index
    %c0_11 = arith.constant 0 : index
    %30 = vector.load %arg2[%c0_10, %c0_11] : memref<128x128xbf16, #tpu.memory_space<vmem>>, vector<128x128xbf16>
    %cst_12 = arith.constant dense<0.000000e+00> : vector<16x128xf32>
    %31 = tpu.matmul %29, %30, %cst_12 {dimension_numbers = #tpu.dot_dimension_numbers<[1], [0], [0], [1], [0, 0, 1, 1], [], []>} : vector<16x128xbf16>, vector<128x128xbf16>, vector<16x128xf32> -> vector<16x128xf32>
    %c0_13 = arith.constant 0 : index
    %c0_14 = arith.constant 0 : index
    %32 = vector.load %arg3[%c0_13, %c0_14] : memref<1x128xf32, #tpu.memory_space<vmem>>, vector<1x128xf32>
    %33 = vector.broadcast %32 : vector<1x128xf32> to vector<16x128xf32>
    %34 = arith.addf %31, %33 : vector<16x128xf32>
    %35 = arith.addf %0, %34 : vector<16x128xf32>
    %c0_15 = arith.constant 0 : index
    %c0_16 = arith.constant 0 : index
    %36 = vector.load %arg6[%c0_15, %c0_16] : memref<16x128xf32, #tpu.memory_space<vmem>>, vector<16x128xf32>
    tpu.vector_store %arg6[%c0_15, %c0_16], %35 {strides = array<i32>} : memref<16x128xf32, #tpu.memory_space<vmem>>, vector<16x128xf32>,
    return
  }
  func.func @transform_0(%arg0: i32) -> (i32, i32) {
    %c0_i32 = arith.constant 0 : i32
    %c0_i32_0 = arith.constant 0 : i32
    return %arg0, %c0_i32 : i32, i32
  }
  func.func @transform_1(%arg0: i32) -> (i32, i32) {
    %c0_i32 = arith.constant 0 : i32
    %c0_i32_0 = arith.constant 0 : i32
    %c0_i32_1 = arith.constant 0 : i32
    return %c0_i32, %c0_i32_0 : i32, i32
  }
  func.func @transform_2(%arg0: i32) -> (i32, i32) {
    %c0_i32 = arith.constant 0 : i32
    %c0_i32_0 = arith.constant 0 : i32
    %c0_i32_1 = arith.constant 0 : i32
    return %c0_i32, %c0_i32_0 : i32, i32
  }
  func.func @transform_3(%arg0: i32) -> (i32, i32) {
    %c0_i32 = arith.constant 0 : i32
    %c0_i32_0 = arith.constant 0 : i32
    %c0_i32_1 = arith.constant 0 : i32
    return %c0_i32, %c0_i32_0 : i32, i32
  }
  func.func @transform_4(%arg0: i32) -> (i32, i32) {
    %c0_i32 = arith.constant 0 : i32
    %c0_i32_0 = arith.constant 0 : i32
    %c0_i32_1 = arith.constant 0 : i32
    return %c0_i32, %c0_i32_0 : i32, i32
  }
  func.func @transform_5(%arg0: i32) -> (i32, i32) {
    %c0_i32 = arith.constant 0 : i32
    %c0_i32_0 = arith.constant 0 : i32
    return %arg0, %c0_i32 : i32, i32
  }
}

</mosaic_0001>

<llo_original>
// kernel: tpu_custom_call.1
$region0: #{tpu_custom_call.1}
  #allocation0 [shape = 'u32[]', space=smem, size = 0x4, offset = 0x4, fixed_abs, tag = 'smem constant byte address 0x4 - core index']
  #allocation1 [shape = 'u32[144,128]{1,0:T(1,128)}', space=vmem, size = 0x12000, scoped, tag = 'internal scratch']
  %s0 = inlined_call_operand.hbm [shape: f32[16,128], index: 0, kind: input, shape index: {}]
  %s1 = inlined_call_operand.hbm [shape: bf16[128,128], index: 1, kind: input, shape index: {}]
  %s2 = inlined_call_operand.vmem [shape: f32[1,128], index: 2, kind: input, shape index: {}]
  %s3 = inlined_call_operand.vmem [shape: f32[1,128], index: 3, kind: input, shape index: {}]
  %s4 = inlined_call_operand.vmem [shape: f32[1,128], index: 4, kind: input, shape index: {}]
  %s5 = inlined_call_operand.hbm [shape: f32[16,128], index: 5, kind: output, shape index: {}]
  %s6 = sld [smem:[#allocation0]]
  $region38: #{tpu_custom_call.1} parent=0
    _
  %s8 = ssub.s32 1, %s6
  %s9 = scalar_select 0, %s8, %s6
  $region1: #{tpu_custom_call.1} parent=0
    #allocation2 [shape = 'u8[8192]{0}', space=vmem, size = 0x2000, scoped, tag = 'input window, operand 0, single buffered']
    #allocation3 [shape = 's32[1]{0}', space=sflag, size = 0x4, scoped, tag = 'scoped memory for tpu_custom_call.1']
    #allocation4 [shape = 's32[1]{0}', space=sflag, size = 0x4, scoped, tag = 'scoped memory for tpu_custom_call.1']
    #allocation5 [shape = 'u8[32768]{0}', space=vmem, size = 0x8000, scoped, tag = 'input window, operand 1, single buffered']
    #allocation6 [shape = 's32[1]{0}', space=sflag, size = 0x4, scoped, tag = 'scoped memory for tpu_custom_call.1']
    #allocation7 [shape = 'u8[8192]{0}', space=vmem, size = 0x2000, scoped, tag = 'output window, operand 0, single buffered']
    %10 = vsyncpa [#allocation3], 0
    %11 = vsyncpa [#allocation6], 0
    %12 = vsyncpa [#allocation4], 0
    // Predicated region
    $region2: #{tpu_custom_call.1} parent=1 // pred_check
      _
    $region3: #{tpu_custom_call.1} parent=1 // pred_check_branch
      %14 = sbr.rel (0) target = $region5
    $region4: #{tpu_custom_call.1} parent=1 // pred_region
      %s16 = ssub.s32 256, 256
      %17 = vsyncadd [#allocation3], %s16
      %s18 = sshll.u32 [#allocation2], 4
      %s19 = int_to_ptr.vmem [resolvable:$true] %s18
      %24 = dma.hbm_to_vmem [thread:$0]  %s0, 256, %s19, [#allocation3], 128, 128, 8
    $region5: #{tpu_custom_call.1} parent=1 // pred_fallthru
      _
    // Predicated region
    $region6: #{tpu_custom_call.1} parent=1 // pred_check
      _
    $region7: #{tpu_custom_call.1} parent=1 // pred_check_branch
      %26 = sbr.rel (0) target = $region9
    $region8: #{tpu_custom_call.1} parent=1 // pred_region
      %s28 = ssub.s32 1024, 1024
      %29 = vsyncadd [#allocation6], %s28
      %s30 = sshll.u32 [#allocation5], 4
      %s31 = int_to_ptr.vmem [resolvable:$true] %s30
      %36 = dma.hbm_to_vmem [thread:$0]  %s1, 1024, %s31, [#allocation6], 64, 64, 4
    $region9: #{tpu_custom_call.1} parent=1 // pred_fallthru
      _
    // Predicated region
    $region10: #{tpu_custom_call.1} parent=1 // pred_check
      _
    $region11: #{tpu_custom_call.1} parent=1 // pred_check_branch
      %38 = sbr.rel (0) target = $region13
    $region12: #{tpu_custom_call.1} parent=1 // pred_region
      _
    $region13: #{tpu_custom_call.1} parent=1 // pred_fallthru
      _
    // Predicated region
    $region14: #{tpu_custom_call.1} parent=1 // pred_check
      _
    $region15: #{tpu_custom_call.1} parent=1 // pred_check_branch
      %40 = sbr.rel (0) target = $region17
    $region16: #{tpu_custom_call.1} parent=1 // pred_region
      _
    $region17: #{tpu_custom_call.1} parent=1 // pred_fallthru
      _
    // Predicated region
    $region18: #{tpu_custom_call.1} parent=1 // pred_check
      _
    $region19: #{tpu_custom_call.1} parent=1 // pred_check_branch
      %42 = sbr.rel (0) target = $region21
    $region20: #{tpu_custom_call.1} parent=1 // pred_region
      _
    $region21: #{tpu_custom_call.1} parent=1 // pred_fallthru
      _
    // Predicated region
    $region22: #{tpu_custom_call.1} parent=1 // pred_check
      _
    $region23: #{tpu_custom_call.1} parent=1 // pred_check_branch
      %44 = sbr.rel (0) target = $region25
    $region24: #{tpu_custom_call.1} parent=1 // pred_region
      %45 = dma.done [#allocation3], 256
    $region25: #{tpu_custom_call.1} parent=1 // pred_fallthru
      _
    // Predicated region
    $region26: #{tpu_custom_call.1} parent=1 // pred_check
      _
    $region27: #{tpu_custom_call.1} parent=1 // pred_check_branch
      %47 = sbr.rel (0) target = $region29
    $region28: #{tpu_custom_call.1} parent=1 // pred_region
      %48 = dma.done [#allocation6], 1024
    $region29: #{tpu_custom_call.1} parent=1 // pred_fallthru
      _
    %v50 = vld [vmem:[#allocation2] sm:$0xff]
    %v51 = vld [vmem:[#allocation2 + $0x8] sm:$0xff]
    %v52 = vlaneseq
    %v53 = vand.u32 %v52, 127
    %vm54 = vcmp.lt.s32.totalorder %v53, 32
    %55 = vadd.xlane.f32.xlu0 %v50
    %v56 = vpop.xlane.xlu0 %55
    %57 = vadd.xlane.f32.xlu0 %v51
    %v58 = vpop.xlane.xlu0 %57
    %v59 = vrcp.pop 32.0
    %v60 = vmul.f32 %v56, %v59
    %v61 = vmul.f32 %v58, %v59
    %v62 = vsub.f32 %v50, %v60
    %v63 = vsub.f32 %v51, %v61
    %v64 = vsel %vm54, %v62, 0.0
    %v65 = vsel %vm54, %v63, 0.0
    %v66 = vmul.f32 %v64, %v64
    %v67 = vmul.f32 %v65, %v65
    %68 = vadd.xlane.f32.xlu0 %v66
    %v69 = vpop.xlane.xlu0 %68
    %70 = vadd.xlane.f32.xlu0 %v67
    %v71 = vpop.xlane.xlu0 %70
    %v72 = vrcp.pop 31.0
    %v73 = vmul.f32 %v69, %v72
    %v74 = vmul.f32 %v71, %v72
    %v75 = vrsqrt.pop %v73
    %v76 = vmul.f32 %v73, %v75
    %vm77 = vcmp.eq.f32.partialorder %v73, inf
    %v78 = vsel %vm77, %v73, %v76
    %vm79 = vcmp.eq.f32.partialorder %v73, 0.0
    %v80 = vand.u32 %v73, 2147483648
    %v81 = vsel %vm79, %v80, %v78
    %v82 = vrsqrt.pop %v74
    %v83 = vmul.f32 %v74, %v82
    %vm84 = vcmp.eq.f32.partialorder %v74, inf
    %v85 = vsel %vm84, %v74, %v83
    %vm86 = vcmp.eq.f32.partialorder %v74, 0.0
    %v87 = vand.u32 %v74, 2147483648
    %v88 = vsel %vm86, %v87, %v85
    %v89 = vadd.f32 %v81, 1e-06
    %v90 = vadd.f32 %v88, 1e-06
    %v91 = vrcp.pop %v89
    %v92 = vrcp.pop %v90
    %v93 = vld [vmem:[%s3] sm:$0x1]
    %v95 = vlaneseq
    %v96 = vshrl.u32 %v95, 7
    %v97 = vsub.s32 0, %v96
    %v98 = vrot.slane %v93, %v97
    %v100 = vmul.f32 %v98, %v64
    %v101 = vmul.f32 %v98, %v65
    %v102 = vmul.f32 %v100, %v91
    %v103 = vmul.f32 %v101, %v92
    %v104 = vld [vmem:[%s4] sm:$0x1]
    %v106 = vlaneseq
    %v107 = vshrl.u32 %v106, 7
    %v108 = vsub.s32 0, %v107
    %v109 = vrot.slane %v104, %v108
    %v111 = vadd.f32 %v102, %v109
    %v112 = vadd.f32 %v103, %v109
    %v113 = vpack.c.bf16 %v112, %v111
    %v114 = vld [vmem:[#allocation5] sm:$0xf]
    %v115 = vld [vmem:[#allocation5 + $0x4] sm:$0xf]
    %v116 = vld [vmem:[#allocation5 + $0x8] sm:$0xf]
    %v117 = vld [vmem:[#allocation5 + $0xc] sm:$0xf]
    %v118 = vld [vmem:[#allocation5 + $0x10] sm:$0xf]
    %v119 = vld [vmem:[#allocation5 + $0x14] sm:$0xf]
    %v120 = vld [vmem:[#allocation5 + $0x18] sm:$0xf]
    %v121 = vld [vmem:[#allocation5 + $0x1c] sm:$0xf]
    %v122 = vld [vmem:[#allocation5 + $0x20] sm:$0xf]
    %v123 = vld [vmem:[#allocation5 + $0x24] sm:$0xf]
    %v124 = vld [vmem:[#allocation5 + $0x28] sm:$0xf]
    %v125 = vld [vmem:[#allocation5 + $0x2c] sm:$0xf]
    %v126 = vld [vmem:[#allocation5 + $0x30] sm:$0xf]
    %v127 = vld [vmem:[#allocation5 + $0x34] sm:$0xf]
    %v128 = vld [vmem:[#allocation5 + $0x38] sm:$0xf]
    %v129 = vld [vmem:[#allocation5 + $0x3c] sm:$0xf]
    %v130 = vld [vmem:[%s2] sm:$0x1]
    %v132 = vlaneseq
    %v133 = vshrl.u32 %v132, 7
    %v134 = vsub.s32 0, %v133
    %v135 = vrot.slane %v130, %v134
    %v153 = vunpack.c.l.b16 %v114
    %v154 = vunpack.c.l.b16 %v115
    %v155 = vunpack.c.l.b16 %v116
    %v156 = vunpack.c.l.b16 %v117
    %v157 = vunpack.c.l.b16 %v118
    %v158 = vunpack.c.l.b16 %v119
    %v159 = vunpack.c.l.b16 %v120
    %v160 = vunpack.c.l.b16 %v121
    %v161 = vunpack.c.l.b16 %v122
    %v162 = vunpack.c.l.b16 %v123
    %v163 = vunpack.c.l.b16 %v124
    %v164 = vunpack.c.l.b16 %v125
    %v165 = vunpack.c.l.b16 %v126
    %v166 = vunpack.c.l.b16 %v127
    %v167 = vunpack.c.l.b16 %v128
    %v168 = vunpack.c.l.b16 %v129
    %v169 = vpack.c.b16 %v154, %v153
    %v170 = vpack.c.b16 %v156, %v155
    %v171 = vpack.c.b16 %v158, %v157
    %v172 = vpack.c.b16 %v160, %v159
    %v173 = vpack.c.b16 %v162, %v161
    %v174 = vpack.c.b16 %v164, %v163
    %v175 = vpack.c.b16 %v166, %v165
    %v176 = vpack.c.b16 %v168, %v167
    %185 = vmatprep.subr.bf16.mxu0 0
    %186 = vmatpush1.bf16.msra.mxu0 %v176
    %187 = vmatprep.subr.bf16.mxu0 0
    %188 = vmatpush1.bf16.msra.mxu0 %v175
    %189 = vmatprep.subr.bf16.mxu0 0
    %190 = vmatpush1.bf16.msra.mxu0 %v174
    %191 = vmatprep.subr.bf16.mxu0 0
    %192 = vmatpush1.bf16.msra.mxu0 %v173
    %193 = vmatprep.subr.bf16.mxu0 0
    %194 = vmatpush1.bf16.msra.mxu0 %v172
    %195 = vmatprep.subr.bf16.mxu0 0
    %196 = vmatpush1.bf16.msra.mxu0 %v171
    %197 = vmatprep.subr.bf16.mxu0 0
    %198 = vmatpush1.bf16.msra.mxu0 %v170
    %199 = vmatprep.subr.bf16.mxu0 0
    %200 = vmatpush1.bf16.msra.mxu0 %v169
    %201 = vmatprep.subr.bf16.mxu0 0
    %202 = vmatpush2.bf16.msra.mxu0 0
    %203 = vmatprep.subr.bf16.mxu0 0
    %204 = vmatpush2.bf16.msra.mxu0 0
    %205 = vmatprep.subr.bf16.mxu0 0
    %206 = vmatpush2.bf16.msra.mxu0 0
    %207 = vmatprep.subr.bf16.mxu0 0
    %208 = vmatpush2.bf16.msra.mxu0 0
    %209 = vmatprep.subr.bf16.mxu0 0
    %210 = vmatpush2.bf16.msra.mxu0 0
    %211 = vmatprep.subr.bf16.mxu0 0
    %212 = vmatpush2.bf16.msra.mxu0 0
    %213 = vmatprep.subr.bf16.mxu0 0
    %214 = vmatpush2.bf16.msra.mxu0 0
    %215 = vmatprep.subr.bf16.mxu0 0
    %216 = vmatpush2.bf16.msra.mxu0 0
    %217 = vmatprep.mubr.bf16.mxu0 0
    %218 = vmatmul.mubr.bf16.gmra.mxu0 %v113
    %v219 = vpop.f32.mrf.mxu0
    %v220 = vadd.f32 %v135, %v219
    %v221 = vpop.f32.mrf.mxu0
    %v222 = vpop.f32.mrf.mxu0
    %v223 = vadd.f32 %v135, %v222
    %v224 = vpop.f32.mrf.mxu0
    %225 = vdwg.mxu0
    %v226 = vadd.f32 %v50, %v220
    %v227 = vadd.f32 %v51, %v223
    %228 = vst [vmem:[#allocation7] sm:$0xff] %v226
    %229 = vst [vmem:[#allocation7 + $0x8] sm:$0xff] %v227
    // Predicated region
    $region30: #{tpu_custom_call.1} parent=1 // pred_check
      _
    $region31: #{tpu_custom_call.1} parent=1 // pred_check_branch
      %231 = sbr.rel (0) target = $region33
    $region32: #{tpu_custom_call.1} parent=1 // pred_region
      %s233 = ssub.s32 256, 256
      %234 = vsyncadd [#allocation4], %s233
      %s235 = sshll.u32 [#allocation7], 4
      %s236 = int_to_ptr.vmem [resolvable:$true] %s235
      %241 = dma.vmem_to_hbm [thread:$0]  %s236, 256, %s5, [#allocation4], 128, 128, 8
    $region33: #{tpu_custom_call.1} parent=1 // pred_fallthru
      _
    // Predicated region
    $region34: #{tpu_custom_call.1} parent=1 // pred_check
      _
    $region35: #{tpu_custom_call.1} parent=1 // pred_check_branch
      %243 = sbr.rel (0) target = $region37
    $region36: #{tpu_custom_call.1} parent=1 // pred_region
      %244 = dma.done [#allocation4], 256
    $region37: #{tpu_custom_call.1} parent=1 // pred_fallthru
      _
    %245 = vsyncpa [#allocation3], 1
    %246 = vsyncpa [#allocation6], 1
    %247 = vsyncpa [#allocation4], 1

</llo_original>
